<compile_context>
chip_gen: v6e
topology: v6e:2x2x1
jax: 0.10.0
libtpu: 0.0.40
codegen_flags: <defaults>
</compile_context>

<pallas_src>
import functools

import jax
import jax.numpy as jnp
from jax.experimental import pallas as pl
from jax.experimental.pallas import tpu as pltpu


def _round_up(x, m):
    return ((x + m - 1) // m) * m


def _patch_pos_kernel(x_ref, pos_ref, seg_ref, tab_ref, o_ref, *, depth, n_seg):
    # x_ref:   (tm, pack*Dp)    lane-dense packed patch embeddings
    # pos_ref: (2*n_seg, tm)    transposed positions: sublanes [from_0..from_{n-1},
    #                           to_0..to_{n-1}]; segment j = 2*p + q (q=0 row, q=1 col)
    # seg_ref: (n_seg, kdim)    seg[j, k] = 1.0 iff k // depth == j
    # tab_ref: (kdim, pack*Dp)  block-diagonal [row_emb; col_emb] per packed slot
    # o_ref:   (tm, pack*Dp)
    kdim = seg_ref.shape[1]

    # _discretize + rounded mean of (from, to), entirely in the tiny transposed
    # (2*n_seg, tm) domain (lane-dense pos; ~1% of the main-stream VPU work).
    disc = jnp.round(pos_ref[...] * depth)                       # (2*n_seg, tm)
    idx = jnp.round((disc[:n_seg, :] + disc[n_seg:, :]) * 0.5)   # (n_seg, tm)
    idx = jnp.clip(idx, 0.0, depth - 1.0)        # table-range clamp (gather semantics)
    offs = (jax.lax.broadcasted_iota(jnp.int32, idx.shape, 0) * depth)
    idx = idx + offs.astype(jnp.float32)         # per-segment global one-hot position

    # Expand indices to (tm, kdim) with one tiny TN matmul (the MXU also performs
    # the lane<->sublane transpose), then one compare + one convert per vreg
    # builds the fused one-hot.  No full-tile iota, no per-slot compare loop.
    target = jax.lax.dot_general(
        idx, seg_ref[...], (((0,), (0,)), ((), ())),
        preferred_element_type=jnp.float32)                      # (tm, kdim)
    kiota = jax.lax.broadcasted_iota(jnp.int32, (1, kdim), 1).astype(jnp.float32)
    oh = (target == kiota).astype(jnp.float32)                   # (tm, kdim)

    # One fused MXU gather: row + col embeddings of every packed token at once.
    pos_emb = jnp.dot(oh, tab_ref[...], preferred_element_type=jnp.float32)

    o_ref[...] = (x_ref[...].astype(jnp.float32) + pos_emb).astype(o_ref.dtype)


def patch_position_encoding(input_ids, row_interval, col_interval,
                            row_emb, col_emb, *, max_rows_per_tile=2048):
    """Fused `input_ids + row_emb[row_idx] + col_emb[col_idx]` (Gato patch pos enc).

    input_ids: [B, N, D]; row/col_interval: pairs of [B, N] floats in [0, 1];
    row_emb/col_emb: [discretize_depth, D].
    """
    B, N, D = input_ids.shape
    M = B * N
    depth = row_emb.shape[0]

    # ---- lane-dense packing of the embedding dim ----------------------------
    if D <= 128 and 128 % D == 0:
        pack, Dp = 128 // D, D                  # several tokens per 128-lane row
    elif D % 128 == 0:
        pack, Dp = 1, D                         # already lane aligned
    else:
        pack, Dp = 1, _round_up(D, 128)         # pad D so every store stays unmasked
    n_seg = 2 * pack
    kdim = n_seg * depth

    x2 = input_ids.reshape(M, D)
    row_emb = row_emb.astype(jnp.float32)
    col_emb = col_emb.astype(jnp.float32)
    if Dp != D:                                 # rare fallback (odd embed widths)
        x2 = jnp.pad(x2, ((0, 0), (0, Dp - D)))
        row_emb = jnp.pad(row_emb, ((0, 0), (0, Dp - D)))
        col_emb = jnp.pad(col_emb, ((0, 0), (0, Dp - D)))

    (row_from, row_to), (col_from, col_to) = row_interval, col_interval
    frm = jnp.stack([row_from.reshape(M), col_from.reshape(M)], axis=-1)   # (M, 2)
    to_ = jnp.stack([row_to.reshape(M), col_to.reshape(M)], axis=-1)       # (M, 2)

    # Pad only up to a `pack` multiple (<= pack-1 tokens); ragged last grid
    # blocks are handled by Pallas masking, so the old full-tensor jnp.pad and
    # trailing [:M] slice (two extra HBM passes) are gone.
    rows = pl.cdiv(M, pack)
    m_pad = rows * pack
    if m_pad != M:
        pad = m_pad - M
        x2 = jnp.pad(x2, ((0, pad), (0, 0)))
        frm = jnp.pad(frm, ((0, pad), (0, 0)))
        to_ = jnp.pad(to_, ((0, pad), (0, 0)))

    x_packed = x2.reshape(rows, pack * Dp)      # contiguous reshape (free)

    # Transposed, lane-dense positions: (2*n_seg, rows).  Sublane j < n_seg is
    # the "from" value of segment j (j = 2*p+q; q=0 row, q=1 col of packed slot
    # p), sublane n_seg+j the matching "to" value.  Pos DMA is 4*4*pack bytes
    # per packed row instead of a 512-byte lane-padded row.
    pos_t = jnp.concatenate(
        [frm.reshape(rows, n_seg), to_.reshape(rows, n_seg)], axis=-1
    ).astype(jnp.float32).T                                     # (2*n_seg, rows)

    # Segment-expansion matrix and block-diagonal fused embedding table.
    seg = jnp.kron(jnp.eye(n_seg, dtype=jnp.float32),
                   jnp.ones((1, depth), jnp.float32))           # (n_seg, kdim)
    tab = jnp.concatenate([row_emb, col_emb], axis=0)           # (2*depth, Dp)
    tab_big = jnp.kron(jnp.eye(pack, dtype=jnp.float32), tab)   # (kdim, pack*Dp)

    # ---- tile selection ------------------------------------------------------
    # Multiple-of-128 row tiles keep the transposed-pos block lane aligned when
    # the grid has >1 step; a single full-extent tile otherwise.  Default 2048
    # rows (~1 MiB x-tile) stays inside the 32 MiB default scoped VMEM on every
    # generation; raise max_rows_per_tile (and CompilerParams.vmem_limit_bytes)
    # for 4-8K-row tiles on v5e/v6e.
    tm = min(max_rows_per_tile, _round_up(rows, 128))
    if tm >= rows:
        if rows >= 256:
            tm = _round_up(pl.cdiv(rows, 2), 128)   # >=2 steps so both v7x TCs work
        else:
            tm = rows                               # single full-extent tile
    grid_rows = pl.cdiv(rows, tm)

    kernel = functools.partial(_patch_pos_kernel, depth=depth, n_seg=n_seg)
    itemsize = jnp.dtype(input_ids.dtype).itemsize
    cost = pl.CostEstimate(
        flops=2 * rows * kdim * (pack * Dp) + 2 * rows * n_seg * kdim,
        transcendentals=0,
        bytes_accessed=int(rows * pack * Dp * itemsize * 2       # x in + out
                           + pos_t.size * 4 + seg.size * 4 + tab_big.size * 4))

    out = pl.pallas_call(
        kernel,
        out_shape=jax.ShapeDtypeStruct((rows, pack * Dp), input_ids.dtype),
        grid=(grid_rows,),
        in_specs=[
            pl.BlockSpec((tm, pack * Dp), lambda i: (i, 0)),     # packed x tile
            pl.BlockSpec((2 * n_seg, tm), lambda i: (0, i)),     # lane-dense pos tile
            pl.BlockSpec((n_seg, kdim), lambda i: (0, 0)),       # resident seg matrix
            pl.BlockSpec((kdim, pack * Dp), lambda i: (0, 0)),   # resident fused table
        ],
        out_specs=pl.BlockSpec((tm, pack * Dp), lambda i: (i, 0)),
        compiler_params=pltpu.CompilerParams(
            dimension_semantics=("parallel",)),
        cost_estimate=cost,
    )(x_packed, pos_t, seg, tab_big)

    out = out.reshape(m_pad, Dp)
    if m_pad != M:                   # rare: tokens were padded to a pack multiple
        out = out[:M]
    if Dp != D:                      # rare: embed dim was lane padded
        out = out[:, :D]
    return out.reshape(B, N, D)


def _reference(input_ids, row_interval, col_interval, row_emb, col_emb):
    depth = row_emb.shape[0]
    rf, rt = row_interval
    cf, ct = col_interval
    r_idx = jnp.round((jnp.round(rf * depth) + jnp.round(rt * depth)) / 2).astype(jnp.int32)
    c_idx = jnp.round((jnp.round(cf * depth) + jnp.round(ct * depth)) / 2).astype(jnp.int32)
    return input_ids + row_emb[r_idx] + col_emb[c_idx]


if __name__ == "__main__":
    # Config (GatoConfig analog): layer_width=32, discretize_depth=16
    D = 32            # embedding_dim / layer_width
    DEPTH = 16        # discretize_depth
    B = 2
    GRID = 4          # 4x4 patch grid -> N = 16 patches per image
    N = GRID * GRID

    key = jax.random.PRNGKey(0)
    k_x, k_re, k_ce = jax.random.split(key, 3)

    # Patch embeddings ("input_ids" in the Gato code are already embedded patches)
    input_ids = jax.random.normal(k_x, (B, N, D), dtype=jnp.float32)

    # Embedding tables (nn.Embedding analog)
    row_emb = jax.random.normal(k_re, (DEPTH, D), dtype=jnp.float32) * 0.02
    col_emb = jax.random.normal(k_ce, (DEPTH, D), dtype=jnp.float32) * 0.02

    # Normalized patch position intervals, as Gato builds them: patch i spans
    # [i/GRID, (i+1)/GRID) along each axis.
    r = jnp.arange(GRID, dtype=jnp.float32)
    row_from_1d = jnp.repeat(r / GRID, GRID)          # (N,)
    row_to_1d = jnp.repeat((r + 1) / GRID, GRID)
    col_from_1d = jnp.tile(r / GRID, GRID)
    col_to_1d = jnp.tile((r + 1) / GRID, GRID)

    row_from = jnp.broadcast_to(row_from_1d, (B, N))
    row_to = jnp.broadcast_to(row_to_1d, (B, N))
    col_from = jnp.broadcast_to(col_from_1d, (B, N))
    col_to = jnp.broadcast_to(col_to_1d, (B, N))

    out = patch_position_encoding(
        input_ids, (row_from, row_to), (col_from, col_to), row_emb, col_emb)
    out = jax.block_until_ready(out)

    ref = _reference(input_ids, (row_from, row_to), (col_from, col_to), row_emb, col_emb)
    assert out.shape == (B, N, D)
    assert jnp.allclose(out, ref, atol=1e-5, rtol=1e-5), "mismatch vs reference"

    print("KERNEL_OK")
</pallas_src>

<mosaic_0001>
module attributes {stable_mosaic.version = 11 : i64} {
  func.func @_patch_pos_kernel(%arg0: i32, %arg1: memref<8x128xf32, #tpu.memory_space<vmem>>, %arg2: memref<16x8xf32, #tpu.memory_space<vmem>>, %arg3: memref<8x128xf32, #tpu.memory_space<vmem>>, %arg4: memref<128x128xf32, #tpu.memory_space<vmem>>, %arg5: memref<8x128xf32, #tpu.memory_space<vmem>>) attributes {dimension_semantics = [#tpu.dimension_semantics<parallel>], iteration_bounds = array<i64: 1>, scalar_prefetch = 0 : i64, scratch_operands = 0 : i64, tpu.core_type = #tpu.core_type<tc>, window_params = [{transform_indices = @transform_0, window_bounds = array<i64: 8, 128>}, {transform_indices = @transform_1, window_bounds = array<i64: 16, 8>}, {pipeline_mode = #tpu.pipeline_mode<synchronous>, transform_indices = @transform_2, window_bounds = array<i64: 8, 128>}, {pipeline_mode = #tpu.pipeline_mode<synchronous>, transform_indices = @transform_3, window_bounds = array<i64: 128, 128>}, {transform_indices = @transform_4, window_bounds = array<i64: 8, 128>}]} {
    %c0 = arith.constant 0 : index
    %c0_0 = arith.constant 0 : index
    %0 = vector.load %arg2[%c0, %c0_0] : memref<16x8xf32, #tpu.memory_space<vmem>>, vector<16x8xf32>
    %cst = arith.constant 1.600000e+01 : f32
    %1 = vector.broadcast %cst : f32 to vector<16x8xf32>
    %2 = arith.mulf %0, %1 : vector<16x8xf32>
    %3 = math.roundeven %2 : vector<16x8xf32>
    %4 = vector.extract_strided_slice %3 {offsets = [0, 0], sizes = [8, 8], strides = [1, 1]} : vector<16x8xf32> to vector<8x8xf32>
    %5 = vector.extract_strided_slice %3 {offsets = [8, 0], sizes = [8, 8], strides = [1, 1]} : vector<16x8xf32> to vector<8x8xf32>
    %6 = arith.addf %4, %5 : vector<8x8xf32>
    %cst_1 = arith.constant 5.000000e-01 : f32
    %7 = vector.broadcast %cst_1 : f32 to vector<8x8xf32>
    %8 = arith.mulf %6, %7 : vector<8x8xf32>
    %9 = math.roundeven %8 : vector<8x8xf32>
    %cst_2 = arith.constant 0.000000e+00 : f32
    %cst_3 = arith.constant 1.500000e+01 : f32
    %10 = vector.broadcast %cst_2 : f32 to vector<8x8xf32>
    %11 = arith.maximumf %10, %9 : vector<8x8xf32>
    %12 = vector.broadcast %cst_3 : f32 to vector<8x8xf32>
    %13 = arith.minimumf %12, %11 : vector<8x8xf32>
    %14 = tpu.iota {dimensions = array<i32: 0>} : vector<8x8xi32>
    %c16_i32 = arith.constant 16 : i32
    %15 = vector.broadcast %c16_i32 : i32 to vector<8x8xi32>
    %16 = arith.muli %14, %15 : vector<8x8xi32>
    %17 = arith.sitofp %16 : vector<8x8xi32> to vector<8x8xf32>
    %18 = arith.addf %13, %17 : vector<8x8xf32>
    %c0_4 = arith.constant 0 : index
    %c0_5 = arith.constant 0 : index
    %19 = vector.load %arg3[%c0_4, %c0_5] : memref<8x128xf32, #tpu.memory_space<vmem>>, vector<8x128xf32>
    %cst_6 = arith.constant dense<0.000000e+00> : vector<8x128xf32>
    %20 = tpu.matmul %18, %19, %cst_6 {dimension_numbers = #tpu.dot_dimension_numbers<[0], [0], [1], [1], [0, 1, 1, 1], [], []>} : vector<8x8xf32>, vector<8x128xf32>, vector<8x128xf32> -> vector<8x128xf32>
    %21 = tpu.iota {dimensions = array<i32: 1>} : vector<1x128xi32>
    %22 = arith.sitofp %21 : vector<1x128xi32> to vector<1x128xf32>
    %23 = vector.broadcast %22 : vector<1x128xf32> to vector<8x128xf32>
    %24 = arith.cmpf oeq, %20, %23 : vector<8x128xf32>
    %25 = arith.extui %24 : vector<8x128xi1> to vector<8x128xi32>
    %26 = arith.sitofp %25 : vector<8x128xi32> to vector<8x128xf32>
    %c0_7 = arith.constant 0 : index
    %c0_8 = arith.constant 0 : index
    %27 = vector.load %arg4[%c0_7, %c0_8] : memref<128x128xf32, #tpu.memory_space<vmem>>, vector<128x128xf32>
    %cst_9 = arith.constant dense<0.000000e+00> : vector<8x128xf32>
    %28 = tpu.matmul %26, %27, %cst_9 {dimension_numbers = #tpu.dot_dimension_numbers<[1], [0], [0], [1], [0, 0, 1, 1], [], []>} : vector<8x128xf32>, vector<128x128xf32>, vector<8x128xf32> -> vector<8x128xf32>
    %c0_10 = arith.constant 0 : index
    %c0_11 = arith.constant 0 : index
    %29 = vector.load %arg1[%c0_10, %c0_11] : memref<8x128xf32, #tpu.memory_space<vmem>>, vector<8x128xf32>
    %30 = arith.addf %29, %28 : vector<8x128xf32>
    %c0_12 = arith.constant 0 : index
    %c0_13 = arith.constant 0 : index
    %31 = vector.load %arg5[%c0_12, %c0_13] : memref<8x128xf32, #tpu.memory_space<vmem>>, vector<8x128xf32>
    tpu.vector_store %arg5[%c0_12, %c0_13], %30 {strides = array<i32>} : memref<8x128xf32, #tpu.memory_space<vmem>>, vector<8x128xf32>,
    return
  }
  func.func @transform_0(%arg0: i32) -> (i32, i32) {
    %c0_i32 = arith.constant 0 : i32
    %c0_i32_0 = arith.constant 0 : i32
    return %arg0, %c0_i32 : i32, i32
  }
  func.func @transform_1(%arg0: i32) -> (i32, i32) {
    %c0_i32 = arith.constant 0 : i32
    %c0_i32_0 = arith.constant 0 : i32
    return %c0_i32, %arg0 : i32, i32
  }
  func.func @transform_2(%arg0: i32) -> (i32, i32) {
    %c0_i32 = arith.constant 0 : i32
    %c0_i32_0 = arith.constant 0 : i32
    %c0_i32_1 = arith.constant 0 : i32
    return %c0_i32, %c0_i32_0 : i32, i32
  }
  func.func @transform_3(%arg0: i32) -> (i32, i32) {
    %c0_i32 = arith.constant 0 : i32
    %c0_i32_0 = arith.constant 0 : i32
    %c0_i32_1 = arith.constant 0 : i32
    return %c0_i32, %c0_i32_0 : i32, i32
  }
  func.func @transform_4(%arg0: i32) -> (i32, i32) {
    %c0_i32 = arith.constant 0 : i32
    %c0_i32_0 = arith.constant 0 : i32
    return %arg0, %c0_i32 : i32, i32
  }
}

</mosaic_0001>

<llo_original>
// kernel: tpu_custom_call.1
$region0: #{tpu_custom_call.1}
  #allocation0 [shape = 'u32[]', space=smem, size = 0x4, offset = 0x4, fixed_abs, tag = 'smem constant byte address 0x4 - core index']
  #allocation1 [shape = 'u32[144,128]{1,0:T(1,128)}', space=vmem, size = 0x12000, scoped, tag = 'internal scratch']
  %s0 = inlined_call_operand.vmem [shape: f32[8,128], index: 0, kind: input, shape index: {}]
  %s1 = inlined_call_operand.vmem [shape: f32[16,8], index: 1, kind: input, shape index: {}]
  %s2 = inlined_call_operand.vmem [shape: f32[8,128], index: 2, kind: input, shape index: {}]
  %s3 = inlined_call_operand.hbm [shape: f32[128,128], index: 3, kind: input, shape index: {}]
  %s4 = inlined_call_operand.hbm [shape: f32[8,128], index: 4, kind: output, shape index: {}]
  %s5 = sld [smem:[#allocation0]]
  $region30: #{tpu_custom_call.1} parent=0
    _
  %s7 = ssub.s32 1, %s5
  %s8 = scalar_select 0, %s7, %s5
  $region1: #{tpu_custom_call.1} parent=0
    #allocation2 [shape = 'u8[65536]{0}', space=vmem, size = 0x10000, scoped, tag = 'input window, operand 3, single buffered']
    #allocation3 [shape = 's32[1]{0}', space=sflag, size = 0x4, scoped, tag = 'scoped memory for tpu_custom_call.1']
    #allocation4 [shape = 's32[1]{0}', space=sflag, size = 0x4, scoped, tag = 'scoped memory for tpu_custom_call.1']
    #allocation5 [shape = 'u8[4096]{0}', space=vmem, size = 0x1000, scoped, tag = 'output window, operand 0, single buffered']
    %9 = vsyncpa [#allocation3], 0
    %10 = vsyncpa [#allocation4], 0
    // Predicated region
    $region2: #{tpu_custom_call.1} parent=1 // pred_check
      _
    $region3: #{tpu_custom_call.1} parent=1 // pred_check_branch
      %12 = sbr.rel (0) target = $region5
    $region4: #{tpu_custom_call.1} parent=1 // pred_region
      _
    $region5: #{tpu_custom_call.1} parent=1 // pred_fallthru
      _
    // Predicated region
    $region6: #{tpu_custom_call.1} parent=1 // pred_check
      _
    $region7: #{tpu_custom_call.1} parent=1 // pred_check_branch
      %14 = sbr.rel (0) target = $region9
    $region8: #{tpu_custom_call.1} parent=1 // pred_region
      _
    $region9: #{tpu_custom_call.1} parent=1 // pred_fallthru
      _
    // Predicated region
    $region10: #{tpu_custom_call.1} parent=1 // pred_check
      _
    $region11: #{tpu_custom_call.1} parent=1 // pred_check_branch
      %16 = sbr.rel (0) target = $region13
    $region12: #{tpu_custom_call.1} parent=1 // pred_region
      _
    $region13: #{tpu_custom_call.1} parent=1 // pred_fallthru
      _
    // Predicated region
    $region14: #{tpu_custom_call.1} parent=1 // pred_check
      _
    $region15: #{tpu_custom_call.1} parent=1 // pred_check_branch
      %18 = sbr.rel (0) target = $region17
    $region16: #{tpu_custom_call.1} parent=1 // pred_region
      %s20 = ssub.s32 2048, 2048
      %21 = vsyncadd [#allocation3], %s20
      %s22 = sshll.u32 [#allocation2], 4
      %s23 = int_to_ptr.vmem [resolvable:$true] %s22
      %28 = dma.hbm_to_vmem [thread:$0]  %s3, 2048, %s23, [#allocation3], 128, 128, 8
    $region17: #{tpu_custom_call.1} parent=1 // pred_fallthru
      _
    // Predicated region
    $region18: #{tpu_custom_call.1} parent=1 // pred_check
      _
    $region19: #{tpu_custom_call.1} parent=1 // pred_check_branch
      %30 = sbr.rel (0) target = $region21
    $region20: #{tpu_custom_call.1} parent=1 // pred_region
      %31 = dma.done [#allocation3], 2048
    $region21: #{tpu_custom_call.1} parent=1 // pred_fallthru
      _
    %v32 = vld [vmem:[%s1] sm:$0xff]
    %v33 = vld [vmem:[%s1 + $0x8] sm:$0xff]
    %v34 = vmul.f32 %v32, 16.0
    %v35 = vmul.f32 %v33, 16.0
    %v36 = vround.ne.pseudo %v34
    %v37 = vround.ne.pseudo %v35
    %v38 = vadd.f32 %v36, %v37
    %v39 = vmul.f32 %v38, 0.5
    %v40 = vround.ne.pseudo %v39
    %v41 = vmax.f32 %v40, 0.0
    %v42 = vmin.f32 %v41, 15.0
    %v43 = vlaneseq
    %v44 = vshrl.u32 %v43, 7
    %v45 = vmul.u32 %v44, 16
    %v46 = vcvt.s32.f32 %v45
    %v47 = vadd.f32 %v42, %v46
    %v48 = vld [vmem:[%s2] sm:$0xff]
    %49 = vxpose.xlu0.b32.start [1/16] %v47, 128
    %50 = vxpose.xlu0.b32.cont [2/16] 0.0, 128
    %51 = vxpose.xlu0.b32.cont [3/16] 0.0, 128
    %52 = vxpose.xlu0.b32.cont [4/16] 0.0, 128
    %53 = vxpose.xlu0.b32.cont [5/16] 0.0, 128
    %54 = vxpose.xlu0.b32.cont [6/16] 0.0, 128
    %55 = vxpose.xlu0.b32.cont [7/16] 0.0, 128
    %56 = vxpose.xlu0.b32.cont [8/16] 0.0, 128
    %57 = vxpose.xlu0.b32.cont [9/16] 0.0, 128
    %58 = vxpose.xlu0.b32.cont [10/16] 0.0, 128
    %59 = vxpose.xlu0.b32.cont [11/16] 0.0, 128
    %60 = vxpose.xlu0.b32.cont [12/16] 0.0, 128
    %61 = vxpose.xlu0.b32.cont [13/16] 0.0, 128
    %62 = vxpose.xlu0.b32.cont [14/16] 0.0, 128
    %63 = vxpose.xlu0.b32.cont [15/16] 0.0, 128
    %64 = vxpose.xlu0.b32.end [16/16] 0.0, 128
    %v65 = vpop.trf.xlu0
    %v66 = vpop.trf.xlu0
    %v67 = vpop.trf.xlu0
    %v68 = vpop.trf.xlu0
    %v69 = vpop.trf.xlu0
    %v70 = vpop.trf.xlu0
    %v71 = vpop.trf.xlu0
    %v72 = vpop.trf.xlu0
    %v73 = vpop.trf.xlu0
    %v74 = vpop.trf.xlu0
    %v75 = vpop.trf.xlu0
    %v76 = vpop.trf.xlu0
    %v77 = vpop.trf.xlu0
    %v78 = vpop.trf.xlu0
    %v79 = vpop.trf.xlu0
    %v80 = vpop.trf.xlu0
    %vm81 = vcmask 64512
    %v83 = vsel %vm81, %v65, 0
    %85 = vmatprep.subr.mxu0 0.0
    %86 = vmatpush1.msra.mxu0 0.0
    %87 = vmatprep.subr.mxu0 0.0
    %88 = vmatpush1.msra.mxu0 0.0
    %89 = vmatprep.subr.mxu0 0.0
    %90 = vmatpush1.msra.mxu0 0.0
    %91 = vmatprep.subr.mxu0 0.0
    %92 = vmatpush1.msra.mxu0 0.0
    %93 = vmatprep.subr.mxu0 0.0
    %94 = vmatpush1.msra.mxu0 0.0
    %95 = vmatprep.subr.mxu0 0.0
    %96 = vmatpush1.msra.mxu0 0.0
    %97 = vmatprep.subr.mxu0 0.0
    %98 = vmatpush1.msra.mxu0 0.0
    %99 = vmatprep.subr.mxu0 0.0
    %100 = vmatpush1.msra.mxu0 0.0
    %101 = vmatprep.subr.mxu0 0.0
    %102 = vmatpush1.msra.mxu0 0.0
    %103 = vmatprep.subr.mxu0 0.0
    %104 = vmatpush1.msra.mxu0 0.0
    %105 = vmatprep.subr.mxu0 0.0
    %106 = vmatpush1.msra.mxu0 0.0
    %107 = vmatprep.subr.mxu0 0.0
    %108 = vmatpush1.msra.mxu0 0.0
    %109 = vmatprep.subr.mxu0 0.0
    %110 = vmatpush1.msra.mxu0 0.0
    %111 = vmatprep.subr.mxu0 0.0
    %112 = vmatpush1.msra.mxu0 0.0
    %113 = vmatprep.subr.mxu0 0.0
    %114 = vmatpush1.msra.mxu0 0.0
    %115 = vmatprep.subr.mxu0 0.0
    %116 = vmatpush1.msra.mxu0 %v48
    %117 = vmatprep.subr.mxu0 0.0
    %118 = vmatpush2.msra.mxu0 0.0
    %119 = vmatprep.subr.mxu0 0.0
    %120 = vmatpush2.msra.mxu0 0.0
    %121 = vmatprep.subr.mxu0 0.0
    %122 = vmatpush2.msra.mxu0 0.0
    %123 = vmatprep.subr.mxu0 0.0
    %124 = vmatpush2.msra.mxu0 0.0
    %125 = vmatprep.subr.mxu0 0.0
    %126 = vmatpush2.msra.mxu0 0.0
    %127 = vmatprep.subr.mxu0 0.0
    %128 = vmatpush2.msra.mxu0 0.0
    %129 = vmatprep.subr.mxu0 0.0
    %130 = vmatpush2.msra.mxu0 0.0
    %131 = vmatprep.subr.mxu0 0.0
    %132 = vmatpush2.msra.mxu0 0.0
    %133 = vmatprep.subr.mxu0 0.0
    %134 = vmatpush2.msra.mxu0 0.0
    %135 = vmatprep.subr.mxu0 0.0
    %136 = vmatpush2.msra.mxu0 0.0
    %137 = vmatprep.subr.mxu0 0.0
    %138 = vmatpush2.msra.mxu0 0.0
    %139 = vmatprep.subr.mxu0 0.0
    %140 = vmatpush2.msra.mxu0 0.0
    %141 = vmatprep.subr.mxu0 0.0
    %142 = vmatpush2.msra.mxu0 0.0
    %143 = vmatprep.subr.mxu0 0.0
    %144 = vmatpush2.msra.mxu0 0.0
    %145 = vmatprep.subr.mxu0 0.0
    %146 = vmatpush2.msra.mxu0 0.0
    %147 = vmatprep.subr.mxu0 0.0
    %148 = vmatpush2.msra.mxu0 0.0
    %149 = vmatprep.mubr.f32.mxu0 0.0
    %150 = vmatmul.mubr.f32.gmra.mxu0 %v83
    %v151 = vpop.f32.mrf.mxu0
    %v152 = vadd.f32 0.0, %v151
    %v153 = vpop.f32.mrf.mxu0
    %154 = vdwg.mxu0
    %v155 = vlaneseq
    %v156 = vand.u32 %v155, 127
    %v157 = vcvt.s32.f32 %v156
    %vm158 = vcmp.eq.f32.partialorder %v152, %v157
    %v159 = vsel %vm158, 1, 0
    %v160 = vcvt.s32.f32 %v159
    %v161 = vld [vmem:[#allocation2] sm:$0xff]
    %v162 = vld [vmem:[#allocation2 + $0x8] sm:$0xff]
    %v163 = vld [vmem:[#allocation2 + $0x10] sm:$0xff]
    %v164 = vld [vmem:[#allocation2 + $0x18] sm:$0xff]
    %v165 = vld [vmem:[#allocation2 + $0x20] sm:$0xff]
    %v166 = vld [vmem:[#allocation2 + $0x28] sm:$0xff]
    %v167 = vld [vmem:[#allocation2 + $0x30] sm:$0xff]
    %v168 = vld [vmem:[#allocation2 + $0x38] sm:$0xff]
    %v169 = vld [vmem:[#allocation2 + $0x40] sm:$0xff]
    %v170 = vld [vmem:[#allocation2 + $0x48] sm:$0xff]
    %v171 = vld [vmem:[#allocation2 + $0x50] sm:$0xff]
    %v172 = vld [vmem:[#allocation2 + $0x58] sm:$0xff]
    %v173 = vld [vmem:[#allocation2 + $0x60] sm:$0xff]
    %v174 = vld [vmem:[#allocation2 + $0x68] sm:$0xff]
    %v175 = vld [vmem:[#allocation2 + $0x70] sm:$0xff]
    %v176 = vld [vmem:[#allocation2 + $0x78] sm:$0xff]
    %177 = vmatprep.subr.mxu0 0.0
    %178 = vmatpush1.msra.mxu0 %v176
    %179 = vmatprep.subr.mxu0 0.0
    %180 = vmatpush1.msra.mxu0 %v175
    %181 = vmatprep.subr.mxu0 0.0
    %182 = vmatpush1.msra.mxu0 %v174
    %183 = vmatprep.subr.mxu0 0.0
    %184 = vmatpush1.msra.mxu0 %v173
    %185 = vmatprep.subr.mxu0 0.0
    %186 = vmatpush1.msra.mxu0 %v172
    %187 = vmatprep.subr.mxu0 0.0
    %188 = vmatpush1.msra.mxu0 %v171
    %189 = vmatprep.subr.mxu0 0.0
    %190 = vmatpush1.msra.mxu0 %v170
    %191 = vmatprep.subr.mxu0 0.0
    %192 = vmatpush1.msra.mxu0 %v169
    %193 = vmatprep.subr.mxu0 0.0
    %194 = vmatpush1.msra.mxu0 %v168
    %195 = vmatprep.subr.mxu0 0.0
    %196 = vmatpush1.msra.mxu0 %v167
    %197 = vmatprep.subr.mxu0 0.0
    %198 = vmatpush1.msra.mxu0 %v166
    %199 = vmatprep.subr.mxu0 0.0
    %200 = vmatpush1.msra.mxu0 %v165
    %201 = vmatprep.subr.mxu0 0.0
    %202 = vmatpush1.msra.mxu0 %v164
    %203 = vmatprep.subr.mxu0 0.0
    %204 = vmatpush1.msra.mxu0 %v163
    %205 = vmatprep.subr.mxu0 0.0
    %206 = vmatpush1.msra.mxu0 %v162
    %207 = vmatprep.subr.mxu0 0.0
    %208 = vmatpush1.msra.mxu0 %v161
    %209 = vmatprep.subr.mxu0 0.0
    %210 = vmatpush2.msra.mxu0 0.0
    %211 = vmatprep.subr.mxu0 0.0
    %212 = vmatpush2.msra.mxu0 0.0
    %213 = vmatprep.subr.mxu0 0.0
    %214 = vmatpush2.msra.mxu0 0.0
    %215 = vmatprep.subr.mxu0 0.0
    %216 = vmatpush2.msra.mxu0 0.0
    %217 = vmatprep.subr.mxu0 0.0
    %218 = vmatpush2.msra.mxu0 0.0
    %219 = vmatprep.subr.mxu0 0.0
    %220 = vmatpush2.msra.mxu0 0.0
    %221 = vmatprep.subr.mxu0 0.0
    %222 = vmatpush2.msra.mxu0 0.0
    %223 = vmatprep.subr.mxu0 0.0
    %224 = vmatpush2.msra.mxu0 0.0
    %225 = vmatprep.subr.mxu0 0.0
    %226 = vmatpush2.msra.mxu0 0.0
    %227 = vmatprep.subr.mxu0 0.0
    %228 = vmatpush2.msra.mxu0 0.0
    %229 = vmatprep.subr.mxu0 0.0
    %230 = vmatpush2.msra.mxu0 0.0
    %231 = vmatprep.subr.mxu0 0.0
    %232 = vmatpush2.msra.mxu0 0.0
    %233 = vmatprep.subr.mxu0 0.0
    %234 = vmatpush2.msra.mxu0 0.0
    %235 = vmatprep.subr.mxu0 0.0
    %236 = vmatpush2.msra.mxu0 0.0
    %237 = vmatprep.subr.mxu0 0.0
    %238 = vmatpush2.msra.mxu0 0.0
    %239 = vmatprep.subr.mxu0 0.0
    %240 = vmatpush2.msra.mxu0 0.0
    %241 = vmatprep.mubr.f32.mxu0 0.0
    %242 = vmatmul.mubr.f32.gmra.mxu0 %v160
    %v243 = vpop.f32.mrf.mxu0
    %v244 = vadd.f32 0.0, %v243
    %v245 = vpop.f32.mrf.mxu0
    %246 = vdwg.mxu0
    %v247 = vld [vmem:[%s0] sm:$0xff]
    %v248 = vadd.f32 %v247, %v244
    %249 = vst [vmem:[#allocation5] sm:$0xff] %v248
    // Predicated region
    $region22: #{tpu_custom_call.1} parent=1 // pred_check
      _
    $region23: #{tpu_custom_call.1} parent=1 // pred_check_branch
      %251 = sbr.rel (0) target = $region25
    $region24: #{tpu_custom_call.1} parent=1 // pred_region
      %s253 = ssub.s32 128, 128
      %254 = vsyncadd [#allocation4], %s253
      %s256 = sshll.u32 [#allocation5], 4
      %s257 = int_to_ptr.vmem [resolvable:$true] %s256
      %259 = dma.vmem_to_hbm [thread:$0]  %s257, 128, %s4, [#allocation4]
    $region25: #{tpu_custom_call.1} parent=1 // pred_fallthru
      _
    // Predicated region
    $region26: #{tpu_custom_call.1} parent=1 // pred_check
      _
    $region27: #{tpu_custom_call.1} parent=1 // pred_check_branch
      %261 = sbr.rel (0) target = $region29
    $region28: #{tpu_custom_call.1} parent=1 // pred_region
      %262 = dma.done [#allocation4], 128
    $region29: #{tpu_custom_call.1} parent=1 // pred_fallthru
      _
    %263 = vsyncpa [#allocation3], 1
    %264 = vsyncpa [#allocation4], 1

</llo_original>
